<compile_context>
chip_gen: v7x
topology: tpu7x:2x2x1
jax: 0.10.0
libtpu: 0.0.40
codegen_flags: <defaults>
</compile_context>

<pallas_src>
import jax
import jax.numpy as jnp
from jax.experimental import pallas as pl
from jax.experimental.pallas import tpu as pltpu

LANE = 128
MAX_PER_COPY_BYTES = 17 << 20     # x tile + out tile + weight per buffer copy (~8 MiB x-tile)
MIN_PER_COPY_BYTES = 4 << 20
VMEM_HEADROOM = 8 << 20
MIN_PAR_BLOCK_BYTES = 2 << 20     # don't shrink tiles below this when adding grid steps


def _channel_scale_kernel(x_ref, w_ref, o_ref):
    # Single broadcast multiply per vreg; product computed in f32 (weight is f32),
    # result cast back to the activation dtype.  Casts are no-ops for f32 inputs.
    o_ref[...] = (x_ref[...].astype(jnp.float32) * w_ref[...]).astype(o_ref.dtype)


def _vmem_plan(buffers: int = 2):
    """Per-generation VMEM limit and per-buffer-copy working-set budget."""
    try:
        cap = getattr(pltpu.get_tpu_info(), "vmem_capacity_bytes", None) or (64 << 20)
    except Exception:  # pragma: no cover - conservative fallback (v7x-sized VMEM)
        cap = 64 << 20
    # v7x: 64 MiB physical -> 48 MiB scoped; v5e/v6e: 128 MiB physical -> 64 MiB.
    vmem_limit = min((cap * 3) // 4, 64 << 20)
    per_copy = (vmem_limit - VMEM_HEADROOM) // max(2, buffers)
    per_copy = max(MIN_PER_COPY_BYTES, min(per_copy, MAX_PER_COPY_BYTES))
    return int(vmem_limit), int(per_copy)


def _choose_tiles(rows, cols, itemsize, per_copy_bytes, weight_per_row):
    """(sublane, 128)-aligned (tr, tc) whose x + out + weight tiles fit per_copy_bytes."""
    sub = {4: 8, 2: 16, 1: 32}.get(itemsize, 8)
    min_rows = rows if rows < sub else sub

    # Lane (last-dim) tile: multiple of 128 (or the full extent when smaller),
    # sized so even the minimum row count stays inside the budget.  A row-layout
    # weight pads to 8 sublanes of f32 per lane -> account for it.
    w_lane_overhead = 0 if weight_per_row else 8 * 4
    lane_cap = max(LANE, per_copy_bytes // (max(1, min_rows) * 2 * itemsize + w_lane_overhead))
    if cols <= LANE:
        tc = cols
    elif cols % LANE == 0 and cols <= lane_cap:
        tc = cols
    else:
        tc = max(LANE, min(cols, lane_cap) // LANE * LANE)

    # Row (sublane) tile: fill the remaining budget.  A per-row weight column
    # pads to 128 f32 lanes per row in VMEM -> account for it per row.
    row_budget = per_copy_bytes - (0 if weight_per_row else 8 * tc * 4)
    per_row_bytes = 2 * tc * itemsize + (LANE * 4 if weight_per_row else 0)
    tr_cap = max(sub, row_budget // per_row_bytes)
    if rows <= sub:
        tr = rows
    else:
        tr = max(sub, min(rows, tr_cap) // sub * sub)
    return tr, tc, sub


def _split_for_megacore(rows, cols, tr, tc, itemsize, sub, min_steps=8):
    """Shrink aligned tiles until the grid has >= min_steps steps (v7x: 2 TCs),
    but never below ~2 MiB per tile so per-step overhead stays negligible on
    single-TC v5e/v6e."""
    while pl.cdiv(rows, tr) * pl.cdiv(cols, tc) < min_steps:
        half_tr = (tr // 2) // sub * sub
        if half_tr >= sub and half_tr * tc * itemsize >= MIN_PAR_BLOCK_BYTES:
            tr = half_tr
            continue
        half_tc = (tc // 2) // LANE * LANE
        if half_tc >= LANE and tr * half_tc * itemsize >= MIN_PAR_BLOCK_BYTES:
            tc = half_tc
            continue
        break
    return tr, tc


def channel_scale_2d(x: jax.Array, weight: jax.Array, *, donate_input: bool = False,
                     buffers: int = 2) -> jax.Array:
    """out[n, c, h, w] = x[n, c, h, w] * weight[c]   (NCHW input)."""
    N, C, H, W = x.shape
    assert weight.shape == (C,)
    spatial = H * W
    itemsize = jnp.dtype(x.dtype).itemsize
    w_f32 = weight.astype(jnp.float32)

    # ---- layout selection: keep the output lane dim a big multiple of 128 ----
    if spatial % LANE == 0 or (C * spatial) % LANE != 0:
        # Generic layout (also the ragged fallback): rows = (n, c), lanes = spatial.
        rows, cols = N * C, spatial
        x2 = x.reshape(rows, cols)
        w2 = jnp.tile(w_f32, (N,)).reshape(rows, 1)        # scale of row n*C + c = weight[c]
        weight_per_row = True
    else:
        # Small / 128-unfriendly spatial maps (7x7, 14x14, ...): fold channels into
        # the lane axis; expand the weight once (each weight repeated H*W times).
        rows, cols = N, C * spatial
        x2 = x.reshape(rows, cols)
        w2 = jnp.repeat(w_f32, spatial).reshape(1, cols)
        weight_per_row = False

    # ---- tiling ----
    vmem_limit, per_copy = _vmem_plan(buffers)
    tr, tc, sub = _choose_tiles(rows, cols, itemsize, per_copy, weight_per_row)
    tr, tc = _split_for_megacore(rows, cols, tr, tc, itemsize, sub)
    grid = (pl.cdiv(rows, tr), pl.cdiv(cols, tc))          # rows outer, lanes inner

    def _spec(shape, index_map):
        if buffers != 2:
            return pl.BlockSpec(shape, index_map, pipeline_mode=pl.Buffered(buffers))
        return pl.BlockSpec(shape, index_map)

    x_spec = _spec((tr, tc), lambda i, j: (i, j))
    o_spec = _spec((tr, tc), lambda i, j: (i, j))
    if weight_per_row:
        # Block index independent of the inner (lane) axis -> only re-DMA'd when
        # the row tile changes.
        w_spec = pl.BlockSpec((tr, 1), lambda i, j: (i, 0))
    else:
        w_spec = pl.BlockSpec((1, tc), lambda i, j: (0, j))

    out2 = pl.pallas_call(
        _channel_scale_kernel,
        out_shape=jax.ShapeDtypeStruct((rows, cols), x.dtype),
        grid_spec=pltpu.PrefetchScalarGridSpec(
            num_scalar_prefetch=0,
            grid=grid,
            in_specs=[x_spec, w_spec],
            out_specs=o_spec,
        ),
        compiler_params=pltpu.CompilerParams(
            # Both axes are independent -> shard across v7x's 2 TensorCores.
            dimension_semantics=("parallel", "parallel"),
            vmem_limit_bytes=vmem_limit,
        ),
        # Aliasing reuses the input's HBM allocation for the output (saves
        # footprint only — every byte is still read and written once).
        input_output_aliases=({0: 0} if donate_input else {}),
    )(x2, w2)

    return out2.reshape(N, C, H, W)


if __name__ == "__main__":
    key = jax.random.PRNGKey(0)
    N, C, H, W = 2, 4, 16, 16

    kx, kw = jax.random.split(key)
    x = jax.random.normal(kx, (N, C, H, W), dtype=jnp.float32)

    # Module __init__ sets weight = ones(num_features); perturb deterministically
    # so the scale is non-trivial while staying reproducible.
    weight = jnp.ones((C,), dtype=jnp.float32) + 0.1 * jax.random.normal(
        kw, (C,), dtype=jnp.float32
    )

    out = channel_scale_2d(x, weight)
    out = jax.block_until_ready(out)

    # Reference: input * weight.reshape(C, 1, 1)
    ref = x * weight.reshape(1, C, 1, 1)
    assert out.shape == x.shape and out.dtype == x.dtype
    assert jnp.allclose(out, ref, atol=1e-6, rtol=1e-6)

    print("KERNEL_OK")
</pallas_src>

<mosaic_0001>
module attributes {stable_mosaic.version = 11 : i64} {
  func.func @_channel_scale_kernel(%arg0: i32, %arg1: i32, %arg2: memref<8x256xf32, #tpu.memory_space<vmem>>, %arg3: memref<8x1xf32, #tpu.memory_space<vmem>>, %arg4: memref<8x256xf32, #tpu.memory_space<vmem>>) attributes {dimension_semantics = [#tpu.dimension_semantics<parallel>, #tpu.dimension_semantics<parallel>], iteration_bounds = array<i64: 1, 1>, scalar_prefetch = 0 : i64, scratch_operands = 0 : i64, tpu.core_type = #tpu.core_type<tc>, window_params = [{transform_indices = @transform_0, window_bounds = array<i64: 8, 256>}, {transform_indices = @transform_1, window_bounds = array<i64: 8, 1>}, {transform_indices = @transform_2, window_bounds = array<i64: 8, 256>}]} {
    %c0 = arith.constant 0 : index
    %c0_0 = arith.constant 0 : index
    %0 = vector.load %arg2[%c0, %c0_0] : memref<8x256xf32, #tpu.memory_space<vmem>>, vector<8x256xf32>
    %c0_1 = arith.constant 0 : index
    %c0_2 = arith.constant 0 : index
    %1 = vector.load %arg3[%c0_1, %c0_2] : memref<8x1xf32, #tpu.memory_space<vmem>>, vector<8x1xf32>
    %2 = vector.broadcast %1 : vector<8x1xf32> to vector<8x256xf32>
    %3 = arith.mulf %0, %2 : vector<8x256xf32>
    %c0_3 = arith.constant 0 : index
    %c0_4 = arith.constant 0 : index
    %4 = vector.load %arg4[%c0_3, %c0_4] : memref<8x256xf32, #tpu.memory_space<vmem>>, vector<8x256xf32>
    tpu.vector_store %arg4[%c0_3, %c0_4], %3 {strides = array<i32>} : memref<8x256xf32, #tpu.memory_space<vmem>>, vector<8x256xf32>,
    return
  }
  func.func @transform_0(%arg0: i32, %arg1: i32) -> (i32, i32) {
    %c0_i32 = arith.constant 0 : i32
    return %arg0, %arg1 : i32, i32
  }
  func.func @transform_1(%arg0: i32, %arg1: i32) -> (i32, i32) {
    %c0_i32 = arith.constant 0 : i32
    %c0_i32_0 = arith.constant 0 : i32
    return %arg0, %c0_i32 : i32, i32
  }
  func.func @transform_2(%arg0: i32, %arg1: i32) -> (i32, i32) {
    %c0_i32 = arith.constant 0 : i32
    return %arg0, %arg1 : i32, i32
  }
}

</mosaic_0001>

<llo_original>
// kernel: tpu_custom_call.1
$region0: #{tpu_custom_call.1}
  #allocation0 [shape = 'u32[]', space=smem, size = 0x4, offset = 0x4, fixed_abs, tag = 'smem constant byte address 0x4 - core index']
  #allocation1 [shape = 'u32[144,128]{1,0:T(1,128)}', space=vmem, size = 0x12000, scoped, tag = 'internal scratch']
  %s0 = inlined_call_operand.hbm [shape: f32[8,256], index: 0, kind: input, shape index: {}]
  %s1 = inlined_call_operand.vmem [shape: f32[8,1], index: 1, kind: input, shape index: {}]
  %s2 = inlined_call_operand.hbm [shape: f32[8,256], index: 2, kind: output, shape index: {}]
  %s3 = sld [smem:[#allocation0]]
  $region22: #{tpu_custom_call.1} parent=0
    _
  %s5 = ssub.s32 1, %s3
  %s6 = scalar_select 0, %s5, %s3
  $region1: #{tpu_custom_call.1} parent=0
    #allocation2 [shape = 'u8[8192]{0}', space=vmem, size = 0x2000, scoped, tag = 'input window, operand 0, single buffered']
    #allocation3 [shape = 's32[1]{0}', space=sflag, size = 0x4, scoped, tag = 'scoped memory for tpu_custom_call.1']
    #allocation4 [shape = 's32[1]{0}', space=sflag, size = 0x4, scoped, tag = 'scoped memory for tpu_custom_call.1']
    #allocation5 [shape = 'u8[8192]{0}', space=vmem, size = 0x2000, scoped, tag = 'output window, operand 0, single buffered']
    %7 = vsyncpa [#allocation3], 0
    %8 = vsyncpa [#allocation4], 0
    // Predicated region
    $region2: #{tpu_custom_call.1} parent=1 // pred_check
      _
    $region3: #{tpu_custom_call.1} parent=1 // pred_check_branch
      %10 = sbr.rel (0) target = $region5
    $region4: #{tpu_custom_call.1} parent=1 // pred_region
      %s12 = ssub.s32 256, 256
      %13 = vsyncadd [#allocation3], %s12
      %s15 = sshll.u32 [#allocation2], 4
      %s16 = int_to_ptr.vmem [resolvable:$true] %s15
      %18 = dma.hbm_to_vmem [thread:$0]  %s0, 256, %s16, [#allocation3]
    $region5: #{tpu_custom_call.1} parent=1 // pred_fallthru
      _
    // Predicated region
    $region6: #{tpu_custom_call.1} parent=1 // pred_check
      _
    $region7: #{tpu_custom_call.1} parent=1 // pred_check_branch
      %20 = sbr.rel (0) target = $region9
    $region8: #{tpu_custom_call.1} parent=1 // pred_region
      _
    $region9: #{tpu_custom_call.1} parent=1 // pred_fallthru
      _
    // Predicated region
    $region10: #{tpu_custom_call.1} parent=1 // pred_check
      _
    $region11: #{tpu_custom_call.1} parent=1 // pred_check_branch
      %22 = sbr.rel (0) target = $region13
    $region12: #{tpu_custom_call.1} parent=1 // pred_region
      %23 = dma.done [#allocation3], 256
    $region13: #{tpu_custom_call.1} parent=1 // pred_fallthru
      _
    %v24 = vld [vmem:[#allocation2] sm:$0xff]
    %v25 = vld [vmem:[#allocation2 + $0x8] sm:$0xff]
    %v26 = vld [vmem:[%s1] sm:$0xff]
    %28 = vset.pattern.permute.xlu0 0
    %29 = vperm.xlu0 %28, %v26
    %v30 = vpop.permute.xlu0 %29
    %v32 = vmul.f32 %v24, %v30
    %v33 = vmul.f32 %v25, %v30
    %34 = vst [vmem:[#allocation5] sm:$0xff] %v32
    %35 = vst [vmem:[#allocation5 + $0x8] sm:$0xff] %v33
    // Predicated region
    $region14: #{tpu_custom_call.1} parent=1 // pred_check
      _
    $region15: #{tpu_custom_call.1} parent=1 // pred_check_branch
      %37 = sbr.rel (0) target = $region17
    $region16: #{tpu_custom_call.1} parent=1 // pred_region
      %s39 = ssub.s32 256, 256
      %40 = vsyncadd [#allocation4], %s39
      %s42 = sshll.u32 [#allocation5], 4
      %s43 = int_to_ptr.vmem [resolvable:$true] %s42
      %45 = dma.vmem_to_hbm [thread:$0]  %s43, 256, %s2, [#allocation4]
    $region17: #{tpu_custom_call.1} parent=1 // pred_fallthru
      _
    // Predicated region
    $region18: #{tpu_custom_call.1} parent=1 // pred_check
      _
    $region19: #{tpu_custom_call.1} parent=1 // pred_check_branch
      %47 = sbr.rel (0) target = $region21
    $region20: #{tpu_custom_call.1} parent=1 // pred_region
      %48 = dma.done [#allocation4], 256
    $region21: #{tpu_custom_call.1} parent=1 // pred_fallthru
      _
    %49 = vsyncpa [#allocation3], 1
    %50 = vsyncpa [#allocation4], 1

</llo_original>
